<compile_context>
chip_gen: v7x
topology: tpu7x:2x2x1
jax: 0.10.0
libtpu: 0.0.40
codegen_flags: <defaults>
</compile_context>

<pallas_src>
import math

import jax
import jax.numpy as jnp
from jax import lax
from jax.experimental import pallas as pl
from jax.experimental.pallas import tpu as pltpu

LANE = 128


def _round_up(n, m=LANE):
    return ((n + m - 1) // m) * m


def _full_spec(shape):
    """BlockSpec covering the whole (gridless) array."""
    return pl.BlockSpec(shape, lambda: (0,) * len(shape))


# ---------------------------------------------------------------------------
# Kernel 1: encoder-side attention projection + relayout consumer.
# Run ONCE per source sequence, reused by every decode step.
# ---------------------------------------------------------------------------
def encoder_projection_kernel(enc_ref, we_t_ref, eproj_ref):
    eproj_ref[...] = jnp.einsum('bth,hk->btk', enc_ref[...], we_t_ref[...],
                                preferred_element_type=jnp.float32)


# ---------------------------------------------------------------------------
# Kernel 2: the whole (teacher-forced) decode loop, one grid step per token.
# ---------------------------------------------------------------------------
def decoder_loop_kernel(ids_ref, emb_ref, h0_ref,
                        wi3_ref, wh3_ref, bi3_ref, bh3_ref,
                        eproj_ref, enc_ref, awh_t_ref, ab_ref, av_ref,
                        wc_t_ref, bc_ref, wo_t_ref, bo_ref,
                        out_ref, h_carry):
    B, T, H = enc_ref.shape
    V = emb_ref.shape[0]

    @pl.when(pl.program_id(0) == 0)
    def _init():
        h_carry[...] = h0_ref[...]

    def mm(a, b):
        # At production shapes cast operands to bf16 here on v6e/v7x (f32 accumulate);
        # keep sigmoid/tanh/exp/softmax math in f32 (v5e VPU/EUP have no bf16).
        return jnp.dot(a, b, preferred_element_type=jnp.float32)

    # ----- embedding lookup via one-hot matmul (V tiny here) -----
    # For production vocab sizes gather the B rows from an HBM-resident table instead.
    ids = ids_ref[0]                                                     # (B, 1) int32
    onehot = (lax.broadcasted_iota(jnp.int32, (B, V), 1) == ids).astype(jnp.float32)
    x = mm(onehot, emb_ref[...])                                         # (B, H)
    # TODO(synk): embedding_dropout (p=0.1) is an eval-mode identity here.

    h = h_carry[...]                                                     # (B, H)

    # ----- GRU cell: gates fused into 2 matmuls (packed (H,3H), PyTorch order r,z,n) -----
    gi = mm(x, wi3_ref[...]) + bi3_ref[...]                              # (B, 3H)
    gh = mm(h, wh3_ref[...]) + bh3_ref[...]                              # (B, 3H)
    r = jax.nn.sigmoid(gi[:, :H] + gh[:, :H])
    z = jax.nn.sigmoid(gi[:, H:2 * H] + gh[:, H:2 * H])
    n = jnp.tanh(gi[:, 2 * H:] + r * gh[:, 2 * H:])
    h_new = (1.0 - z) * n + z * h                                        # rnn_output (B, H)

    # ----- attention (Attn.forward, src_len=None path) -----
    # bias folded into the (B,H) hidden projection; encoder projection precomputed.
    hb = mm(h_new, awh_t_ref[...]) + ab_ref[...]                         # (B, H)
    energy = jnp.tanh(eproj_ref[...] + hb[:, None, :])                   # (B, T, H)
    # At production H (>=128) route this contraction through the MXU instead of the
    # VPU multiply + lane reduce used here.
    scores = jnp.sum(energy * av_ref[...][None, :, :], axis=-1)          # (B, T)
    m = jnp.max(scores, axis=-1, keepdims=True)
    e = jnp.exp(scores - m)
    attn = e / jnp.sum(e, axis=-1, keepdims=True)                        # exact softmax

    # ----- context = attn.bmm(enc): VPU multiply + sublane reduce (small T) -----
    ctx = jnp.sum(attn[:, :, None] * enc_ref[...], axis=1)               # (B, H)

    # ----- concat Linear(2H->H)+tanh (single packed matmul), then output Linear -----
    concat_out = jnp.tanh(mm(jnp.concatenate([h_new, ctx], axis=1), wc_t_ref[...])
                          + bc_ref[...])                                 # (B, H)
    logits = mm(concat_out, wo_t_ref[...]) + bo_ref[...]                 # (B, V)

    h_carry[...] = h_new

    # ----- pack the four per-step results into one lane-dense slab: 1 writeback DMA -----
    def pad128(v):
        p = _round_up(v.shape[-1]) - v.shape[-1]
        if p:
            v = jnp.concatenate([v, jnp.zeros((v.shape[0], p), jnp.float32)], axis=-1)
        return v

    out_ref[0] = jnp.concatenate(
        [pad128(logits), pad128(ctx), pad128(h_new), pad128(attn)], axis=-1)


# ---------------------------------------------------------------------------
# Parameter construction / one-time packing (pre-transposed, gate-packed weights)
# ---------------------------------------------------------------------------
def init_params(key, hidden_size, output_size):
    H, V = hidden_size, output_size
    ks = jax.random.split(key, 12)
    u = lambda k, shape, bound: jax.random.uniform(k, shape, jnp.float32, -bound, bound)
    bg, bl2, bo = 1.0 / math.sqrt(H), 1.0 / math.sqrt(2 * H), 1.0 / math.sqrt(H)
    return dict(
        embedding=jax.random.normal(ks[0], (V, H), jnp.float32),
        w_ih=u(ks[1], (3 * H, H), bg), w_hh=u(ks[2], (3 * H, H), bg),
        b_ih=u(ks[3], (3 * H,), bg), b_hh=u(ks[4], (3 * H,), bg),
        attn_w=u(ks[5], (H, 2 * H), bl2), attn_b=u(ks[6], (H,), bl2),
        attn_v=(1.0 / math.sqrt(H)) * jax.random.normal(ks[7], (H,), jnp.float32),
        wc=u(ks[8], (H, 2 * H), bl2), bc=u(ks[9], (H,), bl2),
        wo=u(ks[10], (V, H), bo), bo=u(ks[11], (V,), bo),
    )


def prepare_kernel_params(p):
    """One-time packing: transposed / gate-packed weights so the kernel never transposes."""
    V, H = p['embedding'].shape
    return dict(
        emb=p['embedding'],
        wi_t3=p['w_ih'].T,                    # (H, 3H), gates r|z|n along lanes
        wh_t3=p['w_hh'].T,                    # (H, 3H)
        bi3=p['b_ih'].reshape(1, 3 * H), bh3=p['b_hh'].reshape(1, 3 * H),
        awh_t=p['attn_w'][:, :H].T, awe_t=p['attn_w'][:, H:].T,
        ab=p['attn_b'].reshape(1, H), av=p['attn_v'].reshape(1, H),
        wc_t=p['wc'].T,                       # (2H, H): rows [0:H]=h_new, [H:2H]=ctx
        bc=p['bc'].reshape(1, H),
        wo_t=p['wo'].T, bo=p['bo'].reshape(1, V),
    )


# ---------------------------------------------------------------------------
# Wrappers
# ---------------------------------------------------------------------------
@jax.jit
def precompute_encoder(kp, encoder_outputs):
    """Once per source sequence: batch-first relayout + encoder attention projection."""
    enc_bth = jnp.transpose(encoder_outputs, (1, 0, 2)).astype(jnp.float32)   # (B,T,H)
    B, T, H = enc_bth.shape
    eproj = pl.pallas_call(
        encoder_projection_kernel,
        out_shape=jax.ShapeDtypeStruct((B, T, H), jnp.float32),
        in_specs=[_full_spec((B, T, H)), _full_spec((H, H))],
        out_specs=_full_spec((B, T, H)),
    )(enc_bth, kp['awe_t'])
    return enc_bth, eproj


@jax.jit
def luong_decode(kp, token_steps, last_hidden, enc_bth, eproj):
    """S consecutive LuongAttnDecoderRNN.forward steps (teacher-forced token ids),
    fused in ONE pallas_call: grid=(S,), weights VMEM-resident, hidden carried in scratch."""
    S, B = token_steps.shape
    _, T, H = enc_bth.shape
    V = kp['emb'].shape[0]
    wV, wH, wT = _round_up(V), _round_up(H), _round_up(T)
    slab_w = wV + 2 * wH + wT

    ids = token_steps.astype(jnp.int32).reshape(S, B, 1)
    h0 = last_hidden[0].astype(jnp.float32)                              # (B, H)

    const = lambda shape: pl.BlockSpec(shape, lambda s: (0,) * len(shape))
    in_specs = [
        pl.BlockSpec((1, B, 1), lambda s: (s, 0, 0)),                    # per-step ids
        const((V, H)), const((B, H)),
        const((H, 3 * H)), const((H, 3 * H)), const((1, 3 * H)), const((1, 3 * H)),
        const((B, T, H)), const((B, T, H)),
        const((H, H)), const((1, H)), const((1, H)),
        const((2 * H, H)), const((1, H)),
        const((H, V)), const((1, V)),
    ]

    slab = pl.pallas_call(
        decoder_loop_kernel,
        out_shape=jax.ShapeDtypeStruct((S, B, slab_w), jnp.float32),
        grid=(S,),
        in_specs=in_specs,
        out_specs=pl.BlockSpec((1, B, slab_w), lambda s: (s, 0, 0)),
        scratch_shapes=[pltpu.VMEM((B, H), jnp.float32)],                # carried hidden
        compiler_params=pltpu.CompilerParams(
            dimension_semantics=("arbitrary",)),                         # sequential steps
    )(ids, kp['emb'], h0,
      kp['wi_t3'], kp['wh_t3'], kp['bi3'], kp['bh3'],
      eproj, enc_bth, kp['awh_t'], kp['ab'], kp['av'],
      kp['wc_t'], kp['bc'], kp['wo_t'], kp['bo'])

    logits = slab[:, :, :V]
    context = slab[:, :, wV:wV + H]
    hidden = slab[:, :, wV + wH:wV + wH + H]
    attn = slab[:, :, wV + 2 * wH:wV + 2 * wH + T]
    return logits, context, hidden, attn


def luong_decoder_step(kp, input_seq, last_context, last_hidden, enc_bth, eproj):
    """Single-step call matching the original PyTorch forward signature."""
    del last_context  # accepted but unused by the original forward
    logits, ctx, hid, attn = luong_decode(kp, input_seq[None, :], last_hidden,
                                          enc_bth, eproj)
    return logits[0], ctx[0], hid[0][None], attn[0][:, None, :]


# ---------------------------------------------------------------------------
# Pure-JAX reference mirroring the PyTorch forward (eval mode, src_len=None)
# ---------------------------------------------------------------------------
def reference_forward(p, input_seq, last_context, last_hidden, encoder_outputs):
    del last_context
    hp = lax.Precision.HIGHEST
    T, B, H = encoder_outputs.shape
    x = p['embedding'][input_seq]                         # (B, H)
    h = last_hidden[0]
    gi = jnp.dot(x, p['w_ih'].T, precision=hp) + p['b_ih']
    gh = jnp.dot(h, p['w_hh'].T, precision=hp) + p['b_hh']
    r = jax.nn.sigmoid(gi[:, :H] + gh[:, :H])
    z = jax.nn.sigmoid(gi[:, H:2 * H] + gh[:, H:2 * H])
    n = jnp.tanh(gi[:, 2 * H:] + r * gh[:, 2 * H:])
    h_new = (1.0 - z) * n + z * h                         # rnn_output (B, H)

    enc = jnp.transpose(encoder_outputs, (1, 0, 2))       # (B, T, H)
    Hrep = jnp.broadcast_to(h_new[:, None, :], (B, T, H))
    cat = jnp.concatenate([Hrep, enc], axis=2)            # (B, T, 2H)
    energy = jnp.tanh(jnp.einsum('btk,hk->bth', cat, p['attn_w'], precision=hp)
                      + p['attn_b'])
    scores = jnp.einsum('bth,h->bt', energy, p['attn_v'], precision=hp)
    attn = jax.nn.softmax(scores, axis=-1)                # (B, T)
    context = jnp.einsum('bt,bth->bh', attn, enc, precision=hp)

    concat_out = jnp.tanh(jnp.dot(jnp.concatenate([h_new, context], axis=1),
                                  p['wc'].T, precision=hp) + p['bc'])
    output = jnp.dot(concat_out, p['wo'].T, precision=hp) + p['bo']
    return output, context, h_new[None], attn[:, None, :]


if __name__ == "__main__":
    B, T, H, V, S = 2, 8, 32, 64, 4   # small shapes consistent with the module

    key = jax.random.PRNGKey(0)
    k_p, k_enc, k_hid, k_ids = jax.random.split(key, 4)
    params = init_params(k_p, H, V)
    kp = prepare_kernel_params(params)

    encoder_outputs = jax.random.normal(k_enc, (T, B, H), jnp.float32)
    last_hidden = jax.random.normal(k_hid, (1, B, H), jnp.float32)
    last_context = jnp.zeros((B, H), jnp.float32)
    token_steps = jax.random.randint(k_ids, (S, B), 0, V)

    # Once per sequence: relayout + encoder-side attention projection.
    enc_bth, eproj = precompute_encoder(kp, encoder_outputs)

    # Whole decode (S steps) in a single fused kernel.
    logits_s, ctx_s, hid_s, attn_s = jax.block_until_ready(
        luong_decode(kp, token_steps, last_hidden, enc_bth, eproj))

    # Step-by-step reference (PyTorch-equivalent forward fed its own hidden back).
    h = last_hidden
    ctx_prev = last_context
    for s in range(S):
        ref_out, ref_ctx, h, ref_attn = reference_forward(
            params, token_steps[s], ctx_prev, h, encoder_outputs)
        ctx_prev = ref_ctx
        pairs = ((logits_s[s], ref_out), (ctx_s[s], ref_ctx),
                 (hid_s[s], h[0]), (attn_s[s], ref_attn[:, 0, :]))
        for got, want in pairs:
            err = float(jnp.max(jnp.abs(got - want)))
            assert jnp.allclose(got, want, atol=2e-3, rtol=2e-3), (s, err)

    # Single-step wrapper with the original forward signature.
    out1, ctx1, hid1, attn1 = jax.block_until_ready(
        luong_decoder_step(kp, token_steps[0], last_context, last_hidden, enc_bth, eproj))
    assert out1.shape == (B, V) and ctx1.shape == (B, H)
    assert hid1.shape == (1, B, H) and attn1.shape == (B, 1, T)

    print("KERNEL_OK")
</pallas_src>

<mosaic_0001>
module attributes {stable_mosaic.version = 11 : i64} {
  func.func @encoder_projection_kernel(%arg0: memref<2x8x32xf32, #tpu.memory_space<vmem>>, %arg1: memref<32x32xf32, #tpu.memory_space<vmem>>, %arg2: memref<2x8x32xf32, #tpu.memory_space<vmem>>) attributes {dimension_semantics = [], scalar_prefetch = 0 : i64, scratch_operands = 0 : i64, tpu.core_type = #tpu.core_type<tc>} {
    %c0 = arith.constant 0 : index
    %c0_0 = arith.constant 0 : index
    %c0_1 = arith.constant 0 : index
    %0 = vector.load %arg0[%c0, %c0_0, %c0_1] : memref<2x8x32xf32, #tpu.memory_space<vmem>>, vector<2x8x32xf32>
    %c0_2 = arith.constant 0 : index
    %c0_3 = arith.constant 0 : index
    %1 = vector.load %arg1[%c0_2, %c0_3] : memref<32x32xf32, #tpu.memory_space<vmem>>, vector<32x32xf32>
    "tpu.trace_start"() <{level = 10 : i32, message = "bth,hk->btk"}> : () -> ()
    %cst = arith.constant dense<0.000000e+00> : vector<2x8x32xf32>
    %2 = tpu.matmul %0, %1, %cst {dimension_numbers = #tpu.dot_dimension_numbers<[2], [0], [0, 1], [1], [0, 0, 0, 1, 1, 1], [], []>} : vector<2x8x32xf32>, vector<32x32xf32>, vector<2x8x32xf32> -> vector<2x8x32xf32>
    "tpu.trace_stop"() : () -> ()
    %c0_4 = arith.constant 0 : index
    %c0_5 = arith.constant 0 : index
    %c0_6 = arith.constant 0 : index
    %3 = vector.load %arg2[%c0_4, %c0_5, %c0_6] : memref<2x8x32xf32, #tpu.memory_space<vmem>>, vector<2x8x32xf32>
    tpu.vector_store %arg2[%c0_4, %c0_5, %c0_6], %2 {strides = array<i32>} : memref<2x8x32xf32, #tpu.memory_space<vmem>>, vector<2x8x32xf32>,
    return
  }
}

</mosaic_0001>

<llo_original>
// kernel: precompute_encoder.1
$region0: #{precompute_encoder.1}
  #allocation0 [shape = 'u32[]', space=smem, size = 0x4, offset = 0x4, fixed_abs, tag = 'smem constant byte address 0x4 - core index']
  #allocation1 [shape = 'u32[144,128]{1,0:T(1,128)}', space=vmem, size = 0x12000, scoped, tag = 'internal scratch']
  %s0 = inlined_call_operand.vmem [shape: f32[2,8,32], index: 0, kind: input, shape index: {}]
  %s1 = inlined_call_operand.vmem [shape: f32[32,32], index: 1, kind: input, shape index: {}]
  %s2 = inlined_call_operand.hbm [shape: f32[2,8,32], index: 2, kind: output, shape index: {}]
  %s3 = sld [smem:[#allocation0]]
  $region18: #{precompute_encoder.1} parent=0
    _
  %s5 = ssub.s32 1, %s3
  %s6 = scalar_select 0, %s5, %s3
  $region1: #{precompute_encoder.1} parent=0
    #allocation2 [shape = 'u8[8192]{0}', space=vmem, size = 0x2000, scoped, tag = 'output window, operand 0, single buffered']
    #allocation3 [shape = 's32[1]{0}', space=sflag, size = 0x4, scoped, tag = 'scoped memory for precompute_encoder.1']
    %7 = vsyncpa [#allocation3], 0
    // Predicated region
    $region2: #{precompute_encoder.1} parent=1 // pred_check
      _
    $region3: #{precompute_encoder.1} parent=1 // pred_check_branch
      %9 = sbr.rel (0) target = $region5
    $region4: #{precompute_encoder.1} parent=1 // pred_region
      _
    $region5: #{precompute_encoder.1} parent=1 // pred_fallthru
      _
    // Predicated region
    $region6: #{precompute_encoder.1} parent=1 // pred_check
      _
    $region7: #{precompute_encoder.1} parent=1 // pred_check_branch
      %11 = sbr.rel (0) target = $region9
    $region8: #{precompute_encoder.1} parent=1 // pred_region
      _
    $region9: #{precompute_encoder.1} parent=1 // pred_fallthru
      _
    %v12 = vld [vmem:[%s0] sm:$0xff]
    %v13 = vld [vmem:[%s0 + $0x8] sm:$0xff]
    %v14 = vld [vmem:[%s1] sm:$0xff]
    %v15 = vld [vmem:[%s1 + $0x8] sm:$0xff]
    %v16 = vld [vmem:[%s1 + $0x10] sm:$0xff]
    %v17 = vld [vmem:[%s1 + $0x18] sm:$0xff]
    %vm18 = vcmask 261120
    %v20 = vsel %vm18, %v12, 0
    %v23 = vsel %vm18, %v13, 0
    %25 = vmatprep.subr.mxu0 0.0
    %26 = vmatpush1.msra.mxu0 %v14
    %27 = vmatprep.subr.mxu0 0.0
    %28 = vmatpush1.msra.mxu0 %v15
    %29 = vmatprep.subr.mxu0 0.0
    %30 = vmatpush1.msra.mxu0 %v16
    %31 = vmatprep.subr.mxu0 0.0
    %32 = vmatpush1.msra.mxu0 %v17
    %33 = vmatprep.subr.mxu0 0.0
    %34 = vmatpush1.msra.mxu0 0.0
    %35 = vmatprep.subr.mxu0 0.0
    %36 = vmatpush1.msra.mxu0 0.0
    %37 = vmatprep.subr.mxu0 0.0
    %38 = vmatpush1.msra.mxu0 0.0
    %39 = vmatprep.subr.mxu0 0.0
    %40 = vmatpush1.msra.mxu0 0.0
    %41 = vmatprep.subr.mxu0 0.0
    %42 = vmatpush1.msra.mxu0 0.0
    %43 = vmatprep.subr.mxu0 0.0
    %44 = vmatpush1.msra.mxu0 0.0
    %45 = vmatprep.subr.mxu0 0.0
    %46 = vmatpush1.msra.mxu0 0.0
    %47 = vmatprep.subr.mxu0 0.0
    %48 = vmatpush1.msra.mxu0 0.0
    %49 = vmatprep.subr.mxu0 0.0
    %50 = vmatpush1.msra.mxu0 0.0
    %51 = vmatprep.subr.mxu0 0.0
    %52 = vmatpush1.msra.mxu0 0.0
    %53 = vmatprep.subr.mxu0 0.0
    %54 = vmatpush1.msra.mxu0 0.0
    %55 = vmatprep.subr.mxu0 0.0
    %56 = vmatpush1.msra.mxu0 0.0
    %57 = vmatprep.subr.mxu0 0.0
    %58 = vmatpush1.msra.mxu0 0.0
    %59 = vmatprep.subr.mxu0 0.0
    %60 = vmatpush1.msra.mxu0 0.0
    %61 = vmatprep.subr.mxu0 0.0
    %62 = vmatpush1.msra.mxu0 0.0
    %63 = vmatprep.subr.mxu0 0.0
    %64 = vmatpush1.msra.mxu0 0.0
    %65 = vmatprep.subr.mxu0 0.0
    %66 = vmatpush1.msra.mxu0 0.0
    %67 = vmatprep.subr.mxu0 0.0
    %68 = vmatpush1.msra.mxu0 0.0
    %69 = vmatprep.subr.mxu0 0.0
    %70 = vmatpush1.msra.mxu0 0.0
    %71 = vmatprep.subr.mxu0 0.0
    %72 = vmatpush1.msra.mxu0 0.0
    %73 = vmatprep.subr.mxu0 0.0
    %74 = vmatpush1.msra.mxu0 0.0
    %75 = vmatprep.subr.mxu0 0.0
    %76 = vmatpush1.msra.mxu0 0.0
    %77 = vmatprep.subr.mxu0 0.0
    %78 = vmatpush1.msra.mxu0 0.0
    %79 = vmatprep.subr.mxu0 0.0
    %80 = vmatpush1.msra.mxu0 0.0
    %81 = vmatprep.subr.mxu0 0.0
    %82 = vmatpush1.msra.mxu0 0.0
    %83 = vmatprep.subr.mxu0 0.0
    %84 = vmatpush1.msra.mxu0 0.0
    %85 = vmatprep.subr.mxu0 0.0
    %86 = vmatpush1.msra.mxu0 0.0
    %87 = vmatprep.subr.mxu0 0.0
    %88 = vmatpush1.msra.mxu0 0.0
    %89 = vmatprep.mubr.f32.mxu0 0.0
    %90 = vmatmul.mubr.f32.gmra.mrb[0].mxu0 %v20
    %v91 = vpop.f32.mrb[0].mxu0
    %v92 = vadd.f32 0.0, %v91
    %v93 = vpop.f32.mrb[0].mxu0
    %94 = vmatprep.mubr.f32.mxu0 0.0
    %95 = vmatmul.mubr.f32.gmra.mrb[0].mxu0 %v23
    %v96 = vpop.f32.mrb[0].mxu0
    %v97 = vadd.f32 0.0, %v96
    %v98 = vpop.f32.mrb[0].mxu0
    %99 = vdwg.mxu0
    %100 = vst.msk [vmem:[#allocation2] sm:$0xff] %vm18, %v92
    %101 = vst.msk [vmem:[#allocation2 + $0x8] sm:$0xff] %vm18, %v97
    // Predicated region
    $region10: #{precompute_encoder.1} parent=1 // pred_check
      _
    $region11: #{precompute_encoder.1} parent=1 // pred_check_branch
      %103 = sbr.rel (0) target = $region13
    $region12: #{precompute_encoder.1} parent=1 // pred_region
      %s105 = ssub.s32 256, 256
      %106 = vsyncadd [#allocation3], %s105
      %s107 = sshll.u32 [#allocation2], 4
      %s108 = int_to_ptr.vmem [resolvable:$true] %s107
      %113 = dma.vmem_to_hbm [thread:$0]  %s108, 256, %s2, [#allocation3], 128, 128, 8
    $region13: #{precompute_encoder.1} parent=1 // pred_fallthru
      _
    // Predicated region
    $region14: #{precompute_encoder.1} parent=1 // pred_check
      _
    $region15: #{precompute_encoder.1} parent=1 // pred_check_branch
      %115 = sbr.rel (0) target = $region17
    $region16: #{precompute_encoder.1} parent=1 // pred_region
      %116 = dma.done [#allocation3], 256
    $region17: #{precompute_encoder.1} parent=1 // pred_fallthru
      _
    %117 = vsyncpa [#allocation3], 1

</llo_original>
